<compile_context>
chip_gen: v5e
topology: v5e:2x2
jax: 0.10.0
libtpu: 0.0.40
codegen_flags: <defaults>
</compile_context>

<pallas_src>
import jax
import jax.numpy as jnp
from jax.experimental import pallas as pl
from jax.experimental.pallas import tpu as pltpu


def _round_up(n, m):
    return ((n + m - 1) // m) * m


def _cdiv(a, b):
    return (a + b - 1) // b


# Hedge against minor API renames across jax versions.
_CompilerParams = getattr(pltpu, "CompilerParams", None) or getattr(
    pltpu, "TPUCompilerParams")


# -----------------------------------------------------------------------------
# Kernel: the whole 3-layer MLP fused.  Refs:
#   x (tb, D) | w1 (D, H1p) | b1 (1, H1p) | w2 (H1p, H2p) | b2 (1, H2p)
#   w3 (1, H2p) | b3 (1, 1) | out (1, tb)
# -----------------------------------------------------------------------------
def _mlp_kernel(x_ref, w1_ref, b1_ref, w2_ref, b2_ref, w3_ref, b3_ref, o_ref):
    x = x_ref[...]                                                      # (tb, D)
    h1 = jnp.dot(x, w1_ref[...], preferred_element_type=jnp.float32)   # (tb, H1p)
    h1 = jnp.maximum(h1 + b1_ref[...], 0.0)
    h2 = jnp.dot(h1, w2_ref[...], preferred_element_type=jnp.float32)  # (tb, H2p)
    h2 = jnp.maximum(h2 + b2_ref[...], 0.0)
    # Final layer as a transposed contraction: produces the result directly as
    # a lane-dense (1, tb) row, so the HBM writeback is an unmasked vst.
    out = jnp.einsum("od,bd->ob", w3_ref[...], h2,
                     preferred_element_type=jnp.float32)               # (1, tb)
    o_ref[...] = (out + b3_ref[...]).astype(o_ref.dtype)


# -----------------------------------------------------------------------------
# One-time parameter preparation (hoisted out of the forward hot path).
# -----------------------------------------------------------------------------
def prepare_params(params, *, x_dtype=jnp.float32):
    """Pad hidden widths to a 128-lane multiple, transpose w3 to a row, and
    (optionally) cast w1 to the activation dtype for a caller-supplied bf16 x."""
    H1 = params["w1"].shape[1]
    H2 = params["w2"].shape[1]
    H1p = _round_up(H1, 128)
    H2p = _round_up(H2, 128)
    w1 = jnp.pad(params["w1"], ((0, 0), (0, H1p - H1))).astype(x_dtype)
    b1 = jnp.pad(params["b1"], ((0, 0), (0, H1p - H1)))
    w2 = jnp.pad(params["w2"], ((0, H1p - H1), (0, H2p - H2)))
    b2 = jnp.pad(params["b2"], ((0, 0), (0, H2p - H2)))
    w3 = jnp.pad(params["w3"], ((0, H2p - H2), (0, 0))).T               # (1, H2p)
    b3 = params["b3"]                                                   # (1, 1)
    return dict(w1=w1, b1=b1, w2=w2, b2=b2, w3=w3, b3=b3)


def _vmem_cap_bytes():
    """Per-generation safe VMEM ceiling (~75% of physical)."""
    phys = None
    try:
        phys = int(pltpu.get_tpu_info().vmem_capacity_bytes)
    except Exception:
        phys = None
    if not phys:
        phys = 64 * 2 ** 20  # conservative (v7x-sized) fallback
    # 64 MiB -> 48 MiB (v7x), 128 MiB -> 96 MiB (v5e/v6e).
    return max(16 * 2 ** 20, (phys * 3) // 4)


def _choose_block_b(B, D, x_bytes, H1p, H2p, weight_bytes, vmem_cap, row_mult):
    """Pick the batch tile from a VMEM budget that includes the double-buffered
    x tile, the h1/h2 intermediates and the output tile (not a fixed cap)."""
    per_row = 2 * D * x_bytes + 2 * 4 + (H1p + H2p) * 4
    budget = int((vmem_cap - weight_bytes) * 0.8)        # headroom for scratch
    cap = max(row_mult, budget // per_row)
    if B < 512 and B <= cap:
        # Small batch: one full-extent block (block dims == array dims, so no
        # 8/128 divisibility requirement beyond the row multiple).
        return _round_up(B, row_mult), 1
    # Multi-block: block_b is the output block's lane dim, so keep it a
    # multiple of 128 (lane-dense, unmasked stores, (8,128)-conformant) and
    # force >= 2 blocks so megacore / DMA-compute overlap can kick in.
    cap128 = max(128, (cap // 128) * 128)
    n_blocks = max(2, _cdiv(B, cap128))
    block_b = min(cap128, _round_up(_cdiv(B, n_blocks), 128))
    return block_b, _cdiv(B, block_b)


# -----------------------------------------------------------------------------
# Forward pass.
# -----------------------------------------------------------------------------
def ac_critic_forward(x, prepared, *, block_b=None):
    """x: (B, input_size), f32 or bf16 (caller's choice, no wrapper cast).
    prepared: output of prepare_params().  Returns (B, 1) f32."""
    B, D = x.shape
    w1, b1, w2, b2, w3, b3 = (prepared[k] for k in
                              ("w1", "b1", "w2", "b2", "w3", "b3"))
    assert w1.shape[0] == D, (w1.shape, D)
    H1p = w1.shape[1]
    H2p = w2.shape[1]

    x_bytes = jnp.dtype(x.dtype).itemsize
    row_mult = 8 if x_bytes >= 4 else (16 if x_bytes == 2 else 32)

    weight_bytes = sum(int(a.size) * jnp.dtype(a.dtype).itemsize
                       for a in (w1, b1, w2, b2, w3, b3))
    vmem_cap = _vmem_cap_bytes()

    if block_b is None:
        block_b, n_blocks = _choose_block_b(
            B, D, x_bytes, H1p, H2p, weight_bytes, vmem_cap, row_mult)
    else:
        n_blocks = _cdiv(B, block_b)
        assert block_b % row_mult == 0 or (n_blocks == 1 and block_b == B)
        if n_blocks > 1:
            assert block_b % 128 == 0, "multi-block tiles must be 128-multiples"

    B_pad = block_b * n_blocks
    if B_pad != B:
        x = jnp.pad(x, ((0, B_pad - B), (0, 0)))   # zero rows, sliced off below

    # VMEM estimate including intermediates; limit never exceeds the per-gen cap.
    est = (weight_bytes
           + 2 * block_b * D * x_bytes            # double-buffered x tile
           + 2 * block_b * 4                      # double-buffered (1, tb) out
           + block_b * (H1p + H2p) * 4)           # h1 / h2 intermediates
    vmem_limit = int(min(vmem_cap, max(2 * est, 16 * 2 ** 20)))

    def run(single_buffer_weights):
        res_kw = {}
        if single_buffer_weights and hasattr(pl, "Buffered"):
            res_kw = dict(pipeline_mode=pl.Buffered(1))

        def resident(shape):
            # Constant index_map -> the block stays resident across the grid.
            try:
                return pl.BlockSpec(shape, lambda i: (0,) * len(shape), **res_kw)
            except TypeError:
                return pl.BlockSpec(shape, lambda i: (0,) * len(shape))

        return pl.pallas_call(
            _mlp_kernel,
            out_shape=jax.ShapeDtypeStruct((1, B_pad), jnp.float32),
            grid=(n_blocks,),
            in_specs=[
                pl.BlockSpec((block_b, D), lambda i: (i, 0)),  # x (batch-tiled)
                resident((D, H1p)),    # w1
                resident((1, H1p)),    # b1
                resident((H1p, H2p)),  # w2
                resident((1, H2p)),    # b2
                resident((1, H2p)),    # w3 row
                resident((1, 1)),      # b3
            ],
            # Lane-dense output slab: one (1, block_b) row per grid step.
            out_specs=pl.BlockSpec((1, block_b), lambda i: (0, i)),
            compiler_params=_CompilerParams(
                dimension_semantics=("parallel",),
                vmem_limit_bytes=vmem_limit),
        )(x, w1, b1, w2, b2, w3, b3)

    try:
        out2d = run(single_buffer_weights=True)
    except Exception:
        # Fallback if this jax build does not support pipeline_mode=Buffered(1).
        out2d = run(single_buffer_weights=False)

    return out2d[0, :B].reshape(B, 1)


# -----------------------------------------------------------------------------
# Init & reference.
# -----------------------------------------------------------------------------
def init_params(key, input_size, hidden_sizes=(64, 64)):
    """Deterministic init mimicking PyTorch nn.Linear default (U[-1/sqrt(fan_in), +])."""
    dims = [input_size] + list(hidden_sizes) + [1]
    params = {}
    keys = jax.random.split(key, 2 * (len(dims) - 1))
    for li in range(len(dims) - 1):
        fan_in, fan_out = dims[li], dims[li + 1]
        bound = 1.0 / jnp.sqrt(fan_in)
        w = jax.random.uniform(keys[2 * li], (fan_in, fan_out),
                               minval=-bound, maxval=bound, dtype=jnp.float32)
        b = jax.random.uniform(keys[2 * li + 1], (1, fan_out),
                               minval=-bound, maxval=bound, dtype=jnp.float32)
        params[f"w{li + 1}"] = w
        params[f"b{li + 1}"] = b
    return params


def _reference(x, p):
    h = jnp.maximum(x @ p["w1"] + p["b1"], 0.0)
    h = jnp.maximum(h @ p["w2"] + p["b2"], 0.0)
    return h @ p["w3"] + p["b3"]


if __name__ == "__main__":
    key = jax.random.PRNGKey(0)
    k_x, k_p, k_x2 = jax.random.split(key, 3)

    input_size = 32
    hidden_sizes = (64, 64)
    params = init_params(k_p, input_size, hidden_sizes)
    prepared = prepare_params(params)            # weight prep hoisted out of hot path

    # --- small batch, single full-extent block (exact f32 semantics) ---
    B = 8
    x = jax.random.normal(k_x, (B, input_size), dtype=jnp.float32)
    out = jax.block_until_ready(ac_critic_forward(x, prepared))
    ref = _reference(x, params)
    assert out.shape == (B, 1), out.shape
    assert jnp.allclose(out, ref, atol=1e-4, rtol=1e-4), "f32 single-block mismatch"

    # --- larger, non-tile-multiple batch: multi-block grid + row padding ---
    B2 = 640
    x2 = jax.random.normal(k_x2, (B2, input_size), dtype=jnp.float32)
    out2 = jax.block_until_ready(ac_critic_forward(x2, prepared))
    ref2 = _reference(x2, params)
    assert out2.shape == (B2, 1), out2.shape
    assert jnp.allclose(out2, ref2, atol=1e-4, rtol=1e-4), "f32 multi-block mismatch"

    # --- bf16 x supplied by the caller (no wrapper-side cast), f32 accumulation ---
    prepared_bf16 = prepare_params(params, x_dtype=jnp.bfloat16)
    x_bf = x2.astype(jnp.bfloat16)
    out_bf = jax.block_until_ready(ac_critic_forward(x_bf, prepared_bf16))
    p_bf = dict(params)
    p_bf["w1"] = params["w1"].astype(jnp.bfloat16).astype(jnp.float32)
    ref_bf = _reference(x_bf.astype(jnp.float32), p_bf)
    assert out_bf.shape == (B2, 1), out_bf.shape
    assert jnp.allclose(out_bf, ref_bf, atol=1e-2, rtol=1e-2), "bf16 path mismatch"

    print("KERNEL_OK")
</pallas_src>

<mosaic_0001>
module attributes {stable_mosaic.version = 11 : i64} {
  func.func @_mlp_kernel(%arg0: i32, %arg1: memref<8x32xf32, #tpu.memory_space<vmem>>, %arg2: memref<32x128xf32, #tpu.memory_space<vmem>>, %arg3: memref<1x128xf32, #tpu.memory_space<vmem>>, %arg4: memref<128x128xf32, #tpu.memory_space<vmem>>, %arg5: memref<1x128xf32, #tpu.memory_space<vmem>>, %arg6: memref<1x128xf32, #tpu.memory_space<vmem>>, %arg7: memref<1x1xf32, #tpu.memory_space<vmem>>, %arg8: memref<1x8xf32, #tpu.memory_space<vmem>>) attributes {dimension_semantics = [#tpu.dimension_semantics<parallel>], iteration_bounds = array<i64: 1>, scalar_prefetch = 0 : i64, scratch_operands = 0 : i64, tpu.core_type = #tpu.core_type<tc>, window_params = [{transform_indices = @transform_0, window_bounds = array<i64: 8, 32>}, {pipeline_mode = #tpu.pipeline_mode<synchronous>, transform_indices = @transform_1, window_bounds = array<i64: 32, 128>}, {pipeline_mode = #tpu.pipeline_mode<synchronous>, transform_indices = @transform_2, window_bounds = array<i64: 1, 128>}, {pipeline_mode = #tpu.pipeline_mode<synchronous>, transform_indices = @transform_3, window_bounds = array<i64: 128, 128>}, {pipeline_mode = #tpu.pipeline_mode<synchronous>, transform_indices = @transform_4, window_bounds = array<i64: 1, 128>}, {pipeline_mode = #tpu.pipeline_mode<synchronous>, transform_indices = @transform_5, window_bounds = array<i64: 1, 128>}, {pipeline_mode = #tpu.pipeline_mode<synchronous>, transform_indices = @transform_6, window_bounds = array<i64: 1, 1>}, {transform_indices = @transform_7, window_bounds = array<i64: 1, 8>}]} {
    %c0 = arith.constant 0 : index
    %c0_0 = arith.constant 0 : index
    %0 = vector.load %arg1[%c0, %c0_0] : memref<8x32xf32, #tpu.memory_space<vmem>>, vector<8x32xf32>
    %c0_1 = arith.constant 0 : index
    %c0_2 = arith.constant 0 : index
    %1 = vector.load %arg2[%c0_1, %c0_2] : memref<32x128xf32, #tpu.memory_space<vmem>>, vector<32x128xf32>
    %cst = arith.constant dense<0.000000e+00> : vector<8x128xf32>
    %2 = tpu.matmul %0, %1, %cst {dimension_numbers = #tpu.dot_dimension_numbers<[1], [0], [0], [1], [0, 0, 1, 1], [], []>} : vector<8x32xf32>, vector<32x128xf32>, vector<8x128xf32> -> vector<8x128xf32>
    %c0_3 = arith.constant 0 : index
    %c0_4 = arith.constant 0 : index
    %3 = vector.load %arg3[%c0_3, %c0_4] : memref<1x128xf32, #tpu.memory_space<vmem>>, vector<1x128xf32>
    %4 = vector.broadcast %3 : vector<1x128xf32> to vector<8x128xf32>
    %5 = arith.addf %2, %4 : vector<8x128xf32>
    %cst_5 = arith.constant 0.000000e+00 : f32
    %6 = vector.broadcast %cst_5 : f32 to vector<8x128xf32>
    %7 = arith.maximumf %5, %6 : vector<8x128xf32>
    %c0_6 = arith.constant 0 : index
    %c0_7 = arith.constant 0 : index
    %8 = vector.load %arg4[%c0_6, %c0_7] : memref<128x128xf32, #tpu.memory_space<vmem>>, vector<128x128xf32>
    %cst_8 = arith.constant dense<0.000000e+00> : vector<8x128xf32>
    %9 = tpu.matmul %7, %8, %cst_8 {dimension_numbers = #tpu.dot_dimension_numbers<[1], [0], [0], [1], [0, 0, 1, 1], [], []>} : vector<8x128xf32>, vector<128x128xf32>, vector<8x128xf32> -> vector<8x128xf32>
    %c0_9 = arith.constant 0 : index
    %c0_10 = arith.constant 0 : index
    %10 = vector.load %arg5[%c0_9, %c0_10] : memref<1x128xf32, #tpu.memory_space<vmem>>, vector<1x128xf32>
    %11 = vector.broadcast %10 : vector<1x128xf32> to vector<8x128xf32>
    %12 = arith.addf %9, %11 : vector<8x128xf32>
    %cst_11 = arith.constant 0.000000e+00 : f32
    %13 = vector.broadcast %cst_11 : f32 to vector<8x128xf32>
    %14 = arith.maximumf %12, %13 : vector<8x128xf32>
    %c0_12 = arith.constant 0 : index
    %c0_13 = arith.constant 0 : index
    %15 = vector.load %arg6[%c0_12, %c0_13] : memref<1x128xf32, #tpu.memory_space<vmem>>, vector<1x128xf32>
    "tpu.trace_start"() <{level = 10 : i32, message = "od,bd->ob"}> : () -> ()
    %cst_14 = arith.constant dense<0.000000e+00> : vector<1x8xf32>
    %16 = tpu.matmul %15, %14, %cst_14 {dimension_numbers = #tpu.dot_dimension_numbers<[1], [1], [0], [0], [0, 0, 1, 0], [], []>} : vector<1x128xf32>, vector<8x128xf32>, vector<1x8xf32> -> vector<1x8xf32>
    "tpu.trace_stop"() : () -> ()
    %c0_15 = arith.constant 0 : index
    %c0_16 = arith.constant 0 : index
    %17 = vector.load %arg7[%c0_15, %c0_16] : memref<1x1xf32, #tpu.memory_space<vmem>>, vector<1x1xf32>
    %18 = vector.broadcast %17 : vector<1x1xf32> to vector<1x8xf32>
    %19 = arith.addf %16, %18 : vector<1x8xf32>
    %c0_17 = arith.constant 0 : index
    %c0_18 = arith.constant 0 : index
    %20 = vector.load %arg8[%c0_17, %c0_18] : memref<1x8xf32, #tpu.memory_space<vmem>>, vector<1x8xf32>
    tpu.vector_store %arg8[%c0_17, %c0_18], %19 {strides = array<i32>} : memref<1x8xf32, #tpu.memory_space<vmem>>, vector<1x8xf32>,
    return
  }
  func.func @transform_0(%arg0: i32) -> (i32, i32) {
    %c0_i32 = arith.constant 0 : i32
    %c0_i32_0 = arith.constant 0 : i32
    return %arg0, %c0_i32 : i32, i32
  }
  func.func @transform_1(%arg0: i32) -> (i32, i32) {
    %c0_i32 = arith.constant 0 : i32
    %c0_i32_0 = arith.constant 0 : i32
    %c0_i32_1 = arith.constant 0 : i32
    return %c0_i32, %c0_i32_0 : i32, i32
  }
  func.func @transform_2(%arg0: i32) -> (i32, i32) {
    %c0_i32 = arith.constant 0 : i32
    %c0_i32_0 = arith.constant 0 : i32
    %c0_i32_1 = arith.constant 0 : i32
    return %c0_i32, %c0_i32_0 : i32, i32
  }
  func.func @transform_3(%arg0: i32) -> (i32, i32) {
    %c0_i32 = arith.constant 0 : i32
    %c0_i32_0 = arith.constant 0 : i32
    %c0_i32_1 = arith.constant 0 : i32
    return %c0_i32, %c0_i32_0 : i32, i32
  }
  func.func @transform_4(%arg0: i32) -> (i32, i32) {
    %c0_i32 = arith.constant 0 : i32
    %c0_i32_0 = arith.constant 0 : i32
    %c0_i32_1 = arith.constant 0 : i32
    return %c0_i32, %c0_i32_0 : i32, i32
  }
  func.func @transform_5(%arg0: i32) -> (i32, i32) {
    %c0_i32 = arith.constant 0 : i32
    %c0_i32_0 = arith.constant 0 : i32
    %c0_i32_1 = arith.constant 0 : i32
    return %c0_i32, %c0_i32_0 : i32, i32
  }
  func.func @transform_6(%arg0: i32) -> (i32, i32) {
    %c0_i32 = arith.constant 0 : i32
    %c0_i32_0 = arith.constant 0 : i32
    %c0_i32_1 = arith.constant 0 : i32
    return %c0_i32, %c0_i32_0 : i32, i32
  }
  func.func @transform_7(%arg0: i32) -> (i32, i32) {
    %c0_i32 = arith.constant 0 : i32
    %c0_i32_0 = arith.constant 0 : i32
    return %c0_i32, %arg0 : i32, i32
  }
}

module attributes {stable_mosaic.version = 11 : i64} {
  func.func @_mlp_kernel(%arg0: i32, %arg1: memref<8x32xf32, #tpu.memory_space<vmem>>, %arg2: memref<32x128xf32, #tpu.memory_space<vmem>>, %arg3: memref<1x128xf32, #tpu.memory_space<vmem>>, %arg4: memref<128x128xf32, #tpu.memory_space<vmem>>, %arg5: memref<1x128xf32, #tpu.memory_space<vmem>>, %arg6: memref<1x128xf32, #tpu.memory_space<vmem>>, %arg7: memref<1x1xf32, #tpu.memory_space<vmem>>, %arg8: memref<1x8xf32, #tpu.memory_space<vmem>>) attributes {dimension_semantics = [#tpu.dimension_semantics<parallel>], iteration_bounds = array<i64: 1>, scalar_prefetch = 0 : i64, scratch_operands = 0 : i64, tpu.core_type = #tpu.core_type<tc>, window_params = [{transform_indices = @transform_0, window_bounds = array<i64: 8, 32>}, {pipeline_mode = #tpu.pipeline_mode<synchronous>, transform_indices = @transform_1, window_bounds = array<i64: 32, 128>}, {pipeline_mode = #tpu.pipeline_mode<synchronous>, transform_indices = @transform_2, window_bounds = array<i64: 1, 128>}, {pipeline_mode = #tpu.pipeline_mode<synchronous>, transform_indices = @transform_3, window_bounds = array<i64: 128, 128>}, {pipeline_mode = #tpu.pipeline_mode<synchronous>, transform_indices = @transform_4, window_bounds = array<i64: 1, 128>}, {pipeline_mode = #tpu.pipeline_mode<synchronous>, transform_indices = @transform_5, window_bounds = array<i64: 1, 128>}, {pipeline_mode = #tpu.pipeline_mode<synchronous>, transform_indices = @transform_6, window_bounds = array<i64: 1, 1>}, {transform_indices = @transform_7, window_bounds = array<i64: 1, 8>}]} {
    %c0 = arith.constant 0 : index
    %c0_0 = arith.constant 0 : index
    %0 = vector.load %arg1[%c0, %c0_0] : memref<8x32xf32, #tpu.memory_space<vmem>>, vector<8x32xf32>
    %c0_1 = arith.constant 0 : index
    %c0_2 = arith.constant 0 : index
    %1 = vector.load %arg2[%c0_1, %c0_2] : memref<32x128xf32, #tpu.memory_space<vmem>>, vector<32x128xf32>
    %cst = arith.constant dense<0.000000e+00> : vector<8x128xf32>
    %2 = tpu.matmul %0, %1, %cst {dimension_numbers = #tpu.dot_dimension_numbers<[1], [0], [0], [1], [0, 0, 1, 1], [], []>} : vector<8x32xf32>, vector<32x128xf32>, vector<8x128xf32> -> vector<8x128xf32>
    %c0_3 = arith.constant 0 : index
    %c0_4 = arith.constant 0 : index
    %3 = vector.load %arg3[%c0_3, %c0_4] : memref<1x128xf32, #tpu.memory_space<vmem>>, vector<1x128xf32>
    %4 = vector.broadcast %3 : vector<1x128xf32> to vector<8x128xf32>
    %5 = arith.addf %2, %4 : vector<8x128xf32>
    %cst_5 = arith.constant 0.000000e+00 : f32
    %6 = vector.broadcast %cst_5 : f32 to vector<8x128xf32>
    %7 = arith.maximumf %5, %6 : vector<8x128xf32>
    %c0_6 = arith.constant 0 : index
    %c0_7 = arith.constant 0 : index
    %8 = vector.load %arg4[%c0_6, %c0_7] : memref<128x128xf32, #tpu.memory_space<vmem>>, vector<128x128xf32>
    %cst_8 = arith.constant dense<0.000000e+00> : vector<8x128xf32>
    %9 = tpu.matmul %7, %8, %cst_8 {dimension_numbers = #tpu.dot_dimension_numbers<[1], [0], [0], [1], [0, 0, 1, 1], [], []>} : vector<8x128xf32>, vector<128x128xf32>, vector<8x128xf32> -> vector<8x128xf32>
    %c0_9 = arith.constant 0 : index
    %c0_10 = arith.constant 0 : index
    %10 = vector.load %arg5[%c0_9, %c0_10] : memref<1x128xf32, #tpu.memory_space<vmem>>, vector<1x128xf32>
    %11 = vector.broadcast %10 : vector<1x128xf32> to vector<8x128xf32>
    %12 = arith.addf %9, %11 : vector<8x128xf32>
    %cst_11 = arith.constant 0.000000e+00 : f32
    %13 = vector.broadcast %cst_11 : f32 to vector<8x128xf32>
    %14 = arith.maximumf %12, %13 : vector<8x128xf32>
    %c0_12 = arith.constant 0 : index
    %c0_13 = arith.constant 0 : index
    %15 = vector.load %arg6[%c0_12, %c0_13] : memref<1x128xf32, #tpu.memory_space<vmem>>, vector<1x128xf32>
    "tpu.trace_start"() <{level = 10 : i32, message = "od,bd->ob"}> : () -> ()
    %cst_14 = arith.constant dense<0.000000e+00> : vector<1x8xf32>
    %16 = tpu.matmul %15, %14, %cst_14 {dimension_numbers = #tpu.dot_dimension_numbers<[1], [1], [0], [0], [0, 0, 1, 0], [], []>} : vector<1x128xf32>, vector<8x128xf32>, vector<1x8xf32> -> vector<1x8xf32>
    "tpu.trace_stop"() : () -> ()
    %c0_15 = arith.constant 0 : index
    %c0_16 = arith.constant 0 : index
    %17 = vector.load %arg7[%c0_15, %c0_16] : memref<1x1xf32, #tpu.memory_space<vmem>>, vector<1x1xf32>
    %18 = vector.broadcast %17 : vector<1x1xf32> to vector<1x8xf32>
    %19 = arith.addf %16, %18 : vector<1x8xf32>
    %c0_17 = arith.constant 0 : index
    %c0_18 = arith.constant 0 : index
    %20 = vector.load %arg8[%c0_17, %c0_18] : memref<1x8xf32, #tpu.memory_space<vmem>>, vector<1x8xf32>
    tpu.vector_store %arg8[%c0_17, %c0_18], %19 {strides = array<i32>} : memref<1x8xf32, #tpu.memory_space<vmem>>, vector<1x8xf32>,
    return
  }
  func.func @transform_0(%arg0: i32) -> (i32, i32) {
    %c0_i32 = arith.constant 0 : i32
    %c0_i32_0 = arith.constant 0 : i32
    return %arg0, %c0_i32 : i32, i32
  }
  func.func @transform_1(%arg0: i32) -> (i32, i32) {
    %c0_i32 = arith.constant 0 : i32
    %c0_i32_0 = arith.constant 0 : i32
    %c0_i32_1 = arith.constant 0 : i32
    return %c0_i32, %c0_i32_0 : i32, i32
  }
  func.func @transform_2(%arg0: i32) -> (i32, i32) {
    %c0_i32 = arith.constant 0 : i32
    %c0_i32_0 = arith.constant 0 : i32
    %c0_i32_1 = arith.constant 0 : i32
    return %c0_i32, %c0_i32_0 : i32, i32
  }
  func.func @transform_3(%arg0: i32) -> (i32, i32) {
    %c0_i32 = arith.constant 0 : i32
    %c0_i32_0 = arith.constant 0 : i32
    %c0_i32_1 = arith.constant 0 : i32
    return %c0_i32, %c0_i32_0 : i32, i32
  }
  func.func @transform_4(%arg0: i32) -> (i32, i32) {
    %c0_i32 = arith.constant 0 : i32
    %c0_i32_0 = arith.constant 0 : i32
    %c0_i32_1 = arith.constant 0 : i32
    return %c0_i32, %c0_i32_0 : i32, i32
  }
  func.func @transform_5(%arg0: i32) -> (i32, i32) {
    %c0_i32 = arith.constant 0 : i32
    %c0_i32_0 = arith.constant 0 : i32
    %c0_i32_1 = arith.constant 0 : i32
    return %c0_i32, %c0_i32_0 : i32, i32
  }
  func.func @transform_6(%arg0: i32) -> (i32, i32) {
    %c0_i32 = arith.constant 0 : i32
    %c0_i32_0 = arith.constant 0 : i32
    %c0_i32_1 = arith.constant 0 : i32
    return %c0_i32, %c0_i32_0 : i32, i32
  }
  func.func @transform_7(%arg0: i32) -> (i32, i32) {
    %c0_i32 = arith.constant 0 : i32
    %c0_i32_0 = arith.constant 0 : i32
    return %c0_i32, %arg0 : i32, i32
  }
}

</mosaic_0001>

<llo_original>
// kernel: tpu_custom_call.1
$region0: #{tpu_custom_call.1}
  #allocation0 [shape = 'u32[]', space=smem, size = 0x4, offset = 0x4, fixed_abs, tag = 'smem constant byte address 0x4 - core index']
  #allocation1 [shape = 'u32[72,128]{1,0:T(1,128)}', space=vmem, size = 0x9000, scoped, tag = 'internal scratch']
  #allocation2 [shape = 'f32[1,1]{1,0:T(1,128)S(1)}', space=vmem, size = 0x200, scoped, tag = 'scoped memory for tpu_custom_call.1']
  %s0 = inlined_call_operand.hbm [shape: f32[8,32], index: 0, kind: input, shape index: {}]
  %s1 = inlined_call_operand.hbm [shape: f32[32,128], index: 1, kind: input, shape index: {}]
  %s2 = inlined_call_operand.vmem [shape: f32[1,128], index: 2, kind: input, shape index: {}]
  %s3 = inlined_call_operand.hbm [shape: f32[128,128], index: 3, kind: input, shape index: {}]
  %s4 = inlined_call_operand.vmem [shape: f32[1,128], index: 4, kind: input, shape index: {}]
  %s5 = inlined_call_operand.vmem [shape: f32[1,128], index: 5, kind: input, shape index: {}]
  %s6 = inlined_call_operand.<no memory space> [shape: f32[1,1], index: 6, kind: input, shape index: {}]
  %s7 = inlined_call_operand.hbm [shape: f32[1,8], index: 7, kind: output, shape index: {}]
  %s8 = sld [smem:[#allocation0]]
  $region50: #{tpu_custom_call.1} parent=0
    _
  %s10 = ssub.s32 1, %s8
  %s11 = scalar_select 0, %s10, %s8
  %v12 = vstv %s6
  %13 = vst [vmem:[#allocation2] sm:$0x1] %v12
  $region1: #{tpu_custom_call.1} parent=0
    #allocation3 [shape = 'u8[4096]{0}', space=vmem, size = 0x1000, scoped, tag = 'input window, operand 0, single buffered']
    #allocation4 [shape = 's32[1]{0}', space=sflag, size = 0x4, scoped, tag = 'scoped memory for tpu_custom_call.1']
    #allocation5 [shape = 's32[1]{0}', space=sflag, size = 0x4, scoped, tag = 'scoped memory for tpu_custom_call.1']
    #allocation6 [shape = 'u8[16384]{0}', space=vmem, size = 0x4000, scoped, tag = 'input window, operand 1, single buffered']
    #allocation7 [shape = 's32[1]{0}', space=sflag, size = 0x4, scoped, tag = 'scoped memory for tpu_custom_call.1']
    #allocation8 [shape = 'u8[65536]{0}', space=vmem, size = 0x10000, scoped, tag = 'input window, operand 3, single buffered']
    #allocation9 [shape = 'u8[512]{0}', space=vmem, size = 0x400, scoped, tag = 'output window, operand 0, single buffered']
    %14 = vsyncpa [#allocation4], 0
    %15 = vsyncpa [#allocation7], 0
    %16 = vsyncpa [#allocation5], 0
    // Predicated region
    $region2: #{tpu_custom_call.1} parent=1 // pred_check
      _
    $region3: #{tpu_custom_call.1} parent=1 // pred_check_branch
      %18 = sbr.rel (0) target = $region5
    $region4: #{tpu_custom_call.1} parent=1 // pred_region
      %20 = vsyncadd [#allocation4], 0
      %s22 = sshll.u32 %s0, 4
      %s23 = int_to_ptr.hbm [resolvable:$true] %s22
      %s24 = sshll.u32 [#allocation3], 4
      %s25 = int_to_ptr.vmem [resolvable:$true] %s24
      %27 = dma.hbm_to_vmem [thread:$0]  %s23, 128, %s25, [#allocation4]
    $region5: #{tpu_custom_call.1} parent=1 // pred_fallthru
      _
    // Predicated region
    $region6: #{tpu_custom_call.1} parent=1 // pred_check
      _
    $region7: #{tpu_custom_call.1} parent=1 // pred_check_branch
      %29 = sbr.rel (0) target = $region9
    $region8: #{tpu_custom_call.1} parent=1 // pred_region
      %31 = vsyncadd [#allocation7], 0
      %s32 = sshll.u32 %s1, 4
      %s33 = int_to_ptr.hbm [resolvable:$true] %s32
      %s34 = sshll.u32 [#allocation6], 4
      %s35 = int_to_ptr.vmem [resolvable:$true] %s34
      %40 = dma.hbm_to_vmem [thread:$0]  %s33, 512, %s35, [#allocation7], 128, 128, 8
    $region9: #{tpu_custom_call.1} parent=1 // pred_fallthru
      _
    // Predicated region
    $region10: #{tpu_custom_call.1} parent=1 // pred_check
      _
    $region11: #{tpu_custom_call.1} parent=1 // pred_check_branch
      %42 = sbr.rel (0) target = $region13
    $region12: #{tpu_custom_call.1} parent=1 // pred_region
      _
    $region13: #{tpu_custom_call.1} parent=1 // pred_fallthru
      _
    // Predicated region
    $region14: #{tpu_custom_call.1} parent=1 // pred_check
      _
    $region15: #{tpu_custom_call.1} parent=1 // pred_check_branch
      %44 = sbr.rel (0) target = $region17
    $region16: #{tpu_custom_call.1} parent=1 // pred_region
      %46 = vsyncadd [#allocation7], 0
      %s47 = sshll.u32 %s3, 4
      %s48 = int_to_ptr.hbm [resolvable:$true] %s47
      %s49 = sshll.u32 [#allocation8], 4
      %s50 = int_to_ptr.vmem [resolvable:$true] %s49
      %55 = dma.hbm_to_vmem [thread:$0]  %s48, 2048, %s50, [#allocation7], 128, 128, 8
    $region17: #{tpu_custom_call.1} parent=1 // pred_fallthru
      _
    // Predicated region
    $region18: #{tpu_custom_call.1} parent=1 // pred_check
      _
    $region19: #{tpu_custom_call.1} parent=1 // pred_check_branch
      %57 = sbr.rel (0) target = $region21
    $region20: #{tpu_custom_call.1} parent=1 // pred_region
      _
    $region21: #{tpu_custom_call.1} parent=1 // pred_fallthru
      _
    // Predicated region
    $region22: #{tpu_custom_call.1} parent=1 // pred_check
      _
    $region23: #{tpu_custom_call.1} parent=1 // pred_check_branch
      %59 = sbr.rel (0) target = $region25
    $region24: #{tpu_custom_call.1} parent=1 // pred_region
      _
    $region25: #{tpu_custom_call.1} parent=1 // pred_fallthru
      _
    // Predicated region
    $region26: #{tpu_custom_call.1} parent=1 // pred_check
      _
    $region27: #{tpu_custom_call.1} parent=1 // pred_check_branch
      %61 = sbr.rel (0) target = $region29
    $region28: #{tpu_custom_call.1} parent=1 // pred_region
      _
    $region29: #{tpu_custom_call.1} parent=1 // pred_fallthru
      _
    // Predicated region
    $region30: #{tpu_custom_call.1} parent=1 // pred_check
      _
    $region31: #{tpu_custom_call.1} parent=1 // pred_check_branch
      %63 = sbr.rel (0) target = $region33
    $region32: #{tpu_custom_call.1} parent=1 // pred_region
      %65 = dma.done [#allocation4], 128
    $region33: #{tpu_custom_call.1} parent=1 // pred_fallthru
      _
    // Predicated region
    $region34: #{tpu_custom_call.1} parent=1 // pred_check
      _
    $region35: #{tpu_custom_call.1} parent=1 // pred_check_branch
      %67 = sbr.rel (0) target = $region37
    $region36: #{tpu_custom_call.1} parent=1 // pred_region
      %69 = dma.done [#allocation7], 512
    $region37: #{tpu_custom_call.1} parent=1 // pred_fallthru
      _
    // Predicated region
    $region38: #{tpu_custom_call.1} parent=1 // pred_check
      _
    $region39: #{tpu_custom_call.1} parent=1 // pred_check_branch
      %71 = sbr.rel (0) target = $region41
    $region40: #{tpu_custom_call.1} parent=1 // pred_region
      %73 = dma.done [#allocation7], 2048
    $region41: #{tpu_custom_call.1} parent=1 // pred_fallthru
      _
    %v74 = vld [vmem:[#allocation3] sm:$0xff]
    %v75 = vld [vmem:[#allocation6] sm:$0xff]
    %v76 = vld [vmem:[#allocation6 + $0x8] sm:$0xff]
    %v77 = vld [vmem:[#allocation6 + $0x10] sm:$0xff]
    %v78 = vld [vmem:[#allocation6 + $0x18] sm:$0xff]
    %v79 = vld [vmem:[%s2] sm:$0x1]
    %v81 = vperm.slane %v79, 0
    %vm83 = vcmask 261120
    %v85 = vsel %vm83, %v74, 0
    %87 = vmatpush.msra.mxu0 0.0
    %88 = vmatpush.msra.mxu0 0.0
    %89 = vmatpush.msra.mxu0 0.0
    %90 = vmatpush.msra.mxu0 0.0
    %91 = vmatpush.msra.mxu0 0.0
    %92 = vmatpush.msra.mxu0 0.0
    %93 = vmatpush.msra.mxu0 0.0
    %94 = vmatpush.msra.mxu0 0.0
    %95 = vmatpush.msra.mxu0 0.0
    %96 = vmatpush.msra.mxu0 0.0
    %97 = vmatpush.msra.mxu0 0.0
    %98 = vmatpush.msra.mxu0 0.0
    %99 = vmatpush.msra.mxu0 %v78
    %100 = vmatpush.msra.mxu0 %v77
    %101 = vmatpush.msra.mxu0 %v76
    %102 = vmatpush.msra.mxu0 %v75
    %103 = vmatmul.f32.gmra.mxu0 %v85
    %v104 = vpop.f32.mrf.mxu0
    %v105 = vadd.f32 %v81, %v104
    %106 = vdwg.mxu0
    %v107 = vmax.f32 %v105, 0.0
    %v108 = vld [vmem:[#allocation8] sm:$0xff]
    %v109 = vld [vmem:[#allocation8 + $0x8] sm:$0xff]
    %v110 = vld [vmem:[#allocation8 + $0x10] sm:$0xff]
    %v111 = vld [vmem:[#allocation8 + $0x18] sm:$0xff]
    %v112 = vld [vmem:[#allocation8 + $0x20] sm:$0xff]
    %v113 = vld [vmem:[#allocation8 + $0x28] sm:$0xff]
    %v114 = vld [vmem:[#allocation8 + $0x30] sm:$0xff]
    %v115 = vld [vmem:[#allocation8 + $0x38] sm:$0xff]
    %v116 = vld [vmem:[#allocation8 + $0x40] sm:$0xff]
    %v117 = vld [vmem:[#allocation8 + $0x48] sm:$0xff]
    %v118 = vld [vmem:[#allocation8 + $0x50] sm:$0xff]
    %v119 = vld [vmem:[#allocation8 + $0x58] sm:$0xff]
    %v120 = vld [vmem:[#allocation8 + $0x60] sm:$0xff]
    %v121 = vld [vmem:[#allocation8 + $0x68] sm:$0xff]
    %v122 = vld [vmem:[#allocation8 + $0x70] sm:$0xff]
    %v123 = vld [vmem:[#allocation8 + $0x78] sm:$0xff]
    %v124 = vld [vmem:[%s4] sm:$0x1]
    %v126 = vperm.slane %v124, 0
    %128 = vmatpush.msra.mxu0 %v123
    %129 = vmatpush.msra.mxu0 %v122
    %130 = vmatpush.msra.mxu0 %v121
    %131 = vmatpush.msra.mxu0 %v120
    %132 = vmatpush.msra.mxu0 %v119
    %133 = vmatpush.msra.mxu0 %v118
    %134 = vmatpush.msra.mxu0 %v117
    %135 = vmatpush.msra.mxu0 %v116
    %136 = vmatpush.msra.mxu0 %v115
    %137 = vmatpush.msra.mxu0 %v114
    %138 = vmatpush.msra.mxu0 %v113
    %139 = vmatpush.msra.mxu0 %v112
    %140 = vmatpush.msra.mxu0 %v111
    %141 = vmatpush.msra.mxu0 %v110
    %142 = vmatpush.msra.mxu0 %v109
    %143 = vmatpush.msra.mxu0 %v108
    %144 = vmatmul.f32.gmra.mxu0 %v107
    %v145 = vpop.f32.mrf.mxu0
    %v146 = vadd.f32 %v126, %v145
    %147 = vdwg.mxu0
    %v148 = vmax.f32 %v146, 0.0
    %v149 = vld [vmem:[%s5] sm:$0x1]
    %v150 = vld [vmem:[#allocation2] sm:$0x1]
    %152 = vset.pattern.permute.xlu0 0
    %153 = vperm.xlu0 %152, %v150
    %v154 = vpop.permute.xlu0 %153
    %v156 = vperm.slane %v154, 0
    %157 = vmatpush.xpose.msra.mxu0 0.0
    %158 = vmatpush.xpose.msra.mxu0 0.0
    %159 = vmatpush.xpose.msra.mxu0 0.0
    %160 = vmatpush.xpose.msra.mxu0 0.0
    %161 = vmatpush.xpose.msra.mxu0 0.0
    %162 = vmatpush.xpose.msra.mxu0 0.0
    %163 = vmatpush.xpose.msra.mxu0 0.0
    %164 = vmatpush.xpose.msra.mxu0 0.0
    %165 = vmatpush.xpose.msra.mxu0 0.0
    %166 = vmatpush.xpose.msra.mxu0 0.0
    %167 = vmatpush.xpose.msra.mxu0 0.0
    %168 = vmatpush.xpose.msra.mxu0 0.0
    %169 = vmatpush.xpose.msra.mxu0 0.0
    %170 = vmatpush.xpose.msra.mxu0 0.0
    %171 = vmatpush.xpose.msra.mxu0 0.0
    %172 = vmatpush.xpose.msra.mxu0 %v148
    %173 = vmatmul.f32.gmra.mxu0 %v149
    %v174 = vpop.f32.mrf.mxu0
    %v175 = vadd.f32 %v156, %v174
    %176 = vdwg.mxu0
    %vm177 = vcmask 57344
    %178 = vst.msk [vmem:[#allocation9] sm:$0x1] %vm177, %v175
    // Predicated region
    $region42: #{tpu_custom_call.1} parent=1 // pred_check
      _
    $region43: #{tpu_custom_call.1} parent=1 // pred_check_branch
      %180 = sbr.rel (0) target = $region45
    $region44: #{tpu_custom_call.1} parent=1 // pred_region
      %182 = vsyncadd [#allocation5], 0
      %s184 = sshll.u32 [#allocation9], 4
      %s185 = int_to_ptr.vmem [resolvable:$true] %s184
      %s186 = sshll.u32 %s7, 4
      %s187 = int_to_ptr.hbm [resolvable:$true] %s186
      %189 = dma.vmem_to_hbm [thread:$0]  %s185, 16, %s187, [#allocation5]
    $region45: #{tpu_custom_call.1} parent=1 // pred_fallthru
      _
    // Predicated region
    $region46: #{tpu_custom_call.1} parent=1 // pred_check
      _
    $region47: #{tpu_custom_call.1} parent=1 // pred_check_branch
      %191 = sbr.rel (0) target = $region49
    $region48: #{tpu_custom_call.1} parent=1 // pred_region
      %193 = dma.done [#allocation5], 16
    $region49: #{tpu_custom_call.1} parent=1 // pred_fallthru
      _
    %194 = vsyncpa [#allocation4], 1
    %195 = vsyncpa [#allocation7], 1
    %196 = vsyncpa [#allocation5], 1

// kernel: tpu_custom_call.1
$region0: #{tpu_custom_call.1}
  #allocation0 [shape = 'u32[]', space=smem, size = 0x4, offset = 0x4, fixed_abs, tag = 'smem constant byte address 0x4 - core index']
  #allocation1 [shape = 'u32[72,128]{1,0:T(1,128)}', space=vmem, size = 0x9000, scoped, tag = 'internal scratch']
  #allocation2 [shape = 'f32[1,1]{1,0:T(1,128)S(1)}', space=vmem, size = 0x200, scoped, tag = 'scoped memory for tpu_custom_call.1']
  %s0 = inlined_call_operand.hbm [shape: f32[8,32], index: 0, kind: input, shape index: {}]
  %s1 = inlined_call_operand.hbm [shape: f32[32,128], index: 1, kind: input, shape index: {}]
  %s2 = inlined_call_operand.vmem [shape: f32[1,128], index: 2, kind: input, shape index: {}]
  %s3 = inlined_call_operand.hbm [shape: f32[128,128], index: 3, kind: input, shape index: {}]
  %s4 = inlined_call_operand.vmem [shape: f32[1,128], index: 4, kind: input, shape index: {}]
  %s5 = inlined_call_operand.vmem [shape: f32[1,128], index: 5, kind: input, shape index: {}]
  %s6 = inlined_call_operand.<no memory space> [shape: f32[1,1], index: 6, kind: input, shape index: {}]
  %s7 = inlined_call_operand.hbm [shape: f32[1,8], index: 7, kind: output, shape index: {}]
  %s8 = sld [smem:[#allocation0]]
  $region50: #{tpu_custom_call.1} parent=0
    _
  %s10 = ssub.s32 1, %s8
  %s11 = scalar_select 0, %s10, %s8
  %v12 = vstv %s6
  %13 = vst [vmem:[#allocation2] sm:$0x1] %v12
  $region1: #{tpu_custom_call.1} parent=0
    #allocation3 [shape = 'u8[4096]{0}', space=vmem, size = 0x1000, scoped, tag = 'input window, operand 0, single buffered']
    #allocation4 [shape = 's32[1]{0}', space=sflag, size = 0x4, scoped, tag = 'scoped memory for tpu_custom_call.1']
    #allocation5 [shape = 's32[1]{0}', space=sflag, size = 0x4, scoped, tag = 'scoped memory for tpu_custom_call.1']
    #allocation6 [shape = 'u8[16384]{0}', space=vmem, size = 0x4000, scoped, tag = 'input window, operand 1, single buffered']
    #allocation7 [shape = 's32[1]{0}', space=sflag, size = 0x4, scoped, tag = 'scoped memory for tpu_custom_call.1']
    #allocation8 [shape = 'u8[65536]{0}', space=vmem, size = 0x10000, scoped, tag = 'input window, operand 3, single buffered']
    #allocation9 [shape = 'u8[512]{0}', space=vmem, size = 0x400, scoped, tag = 'output window, operand 0, single buffered']
    %14 = vsyncpa [#allocation4], 0
    %15 = vsyncpa [#allocation7], 0
    %16 = vsyncpa [#allocation5], 0
    // Predicated region
    $region2: #{tpu_custom_call.1} parent=1 // pred_check
      _
    $region3: #{tpu_custom_call.1} parent=1 // pred_check_branch
      %18 = sbr.rel (0) target = $region5
    $region4: #{tpu_custom_call.1} parent=1 // pred_region
      %20 = vsyncadd [#allocation4], 0
      %s22 = sshll.u32 %s0, 4
      %s23 = int_to_ptr.hbm [resolvable:$true] %s22
      %s24 = sshll.u32 [#allocation3], 4
      %s25 = int_to_ptr.vmem [resolvable:$true] %s24
      %27 = dma.hbm_to_vmem [thread:$0]  %s23, 128, %s25, [#allocation4]
    $region5: #{tpu_custom_call.1} parent=1 // pred_fallthru
      _
    // Predicated region
    $region6: #{tpu_custom_call.1} parent=1 // pred_check
      _
    $region7: #{tpu_custom_call.1} parent=1 // pred_check_branch
      %29 = sbr.rel (0) target = $region9
    $region8: #{tpu_custom_call.1} parent=1 // pred_region
      %31 = vsyncadd [#allocation7], 0
      %s32 = sshll.u32 %s1, 4
      %s33 = int_to_ptr.hbm [resolvable:$true] %s32
      %s34 = sshll.u32 [#allocation6], 4
      %s35 = int_to_ptr.vmem [resolvable:$true] %s34
      %40 = dma.hbm_to_vmem [thread:$0]  %s33, 512, %s35, [#allocation7], 128, 128, 8
    $region9: #{tpu_custom_call.1} parent=1 // pred_fallthru
      _
    // Predicated region
    $region10: #{tpu_custom_call.1} parent=1 // pred_check
      _
    $region11: #{tpu_custom_call.1} parent=1 // pred_check_branch
      %42 = sbr.rel (0) target = $region13
    $region12: #{tpu_custom_call.1} parent=1 // pred_region
      _
    $region13: #{tpu_custom_call.1} parent=1 // pred_fallthru
      _
    // Predicated region
    $region14: #{tpu_custom_call.1} parent=1 // pred_check
      _
    $region15: #{tpu_custom_call.1} parent=1 // pred_check_branch
      %44 = sbr.rel (0) target = $region17
    $region16: #{tpu_custom_call.1} parent=1 // pred_region
      %46 = vsyncadd [#allocation7], 0
      %s47 = sshll.u32 %s3, 4
      %s48 = int_to_ptr.hbm [resolvable:$true] %s47
      %s49 = sshll.u32 [#allocation8], 4
      %s50 = int_to_ptr.vmem [resolvable:$true] %s49
      %55 = dma.hbm_to_vmem [thread:$0]  %s48, 2048, %s50, [#allocation7], 128, 128, 8
    $region17: #{tpu_custom_call.1} parent=1 // pred_fallthru
      _
    // Predicated region
    $region18: #{tpu_custom_call.1} parent=1 // pred_check
      _
    $region19: #{tpu_custom_call.1} parent=1 // pred_check_branch
      %57 = sbr.rel (0) target = $region21
    $region20: #{tpu_custom_call.1} parent=1 // pred_region
      _
    $region21: #{tpu_custom_call.1} parent=1 // pred_fallthru
      _
    // Predicated region
    $region22: #{tpu_custom_call.1} parent=1 // pred_check
      _
    $region23: #{tpu_custom_call.1} parent=1 // pred_check_branch
      %59 = sbr.rel (0) target = $region25
    $region24: #{tpu_custom_call.1} parent=1 // pred_region
      _
    $region25: #{tpu_custom_call.1} parent=1 // pred_fallthru
      _
    // Predicated region
    $region26: #{tpu_custom_call.1} parent=1 // pred_check
      _
    $region27: #{tpu_custom_call.1} parent=1 // pred_check_branch
      %61 = sbr.rel (0) target = $region29
    $region28: #{tpu_custom_call.1} parent=1 // pred_region
      _
    $region29: #{tpu_custom_call.1} parent=1 // pred_fallthru
      _
    // Predicated region
    $region30: #{tpu_custom_call.1} parent=1 // pred_check
      _
    $region31: #{tpu_custom_call.1} parent=1 // pred_check_branch
      %63 = sbr.rel (0) target = $region33
    $region32: #{tpu_custom_call.1} parent=1 // pred_region
      %65 = dma.done [#allocation4], 128
    $region33: #{tpu_custom_call.1} parent=1 // pred_fallthru
      _
    // Predicated region
    $region34: #{tpu_custom_call.1} parent=1 // pred_check
      _
    $region35: #{tpu_custom_call.1} parent=1 // pred_check_branch
      %67 = sbr.rel (0) target = $region37
    $region36: #{tpu_custom_call.1} parent=1 // pred_region
      %69 = dma.done [#allocation7], 512
    $region37: #{tpu_custom_call.1} parent=1 // pred_fallthru
      _
    // Predicated region
    $region38: #{tpu_custom_call.1} parent=1 // pred_check
      _
    $region39: #{tpu_custom_call.1} parent=1 // pred_check_branch
      %71 = sbr.rel (0) target = $region41
    $region40: #{tpu_custom_call.1} parent=1 // pred_region
      %73 = dma.done [#allocation7], 2048
    $region41: #{tpu_custom_call.1} parent=1 // pred_fallthru
      _
    %v74 = vld [vmem:[#allocation3] sm:$0xff]
    %v75 = vld [vmem:[#allocation6] sm:$0xff]
    %v76 = vld [vmem:[#allocation6 + $0x8] sm:$0xff]
    %v77 = vld [vmem:[#allocation6 + $0x10] sm:$0xff]
    %v78 = vld [vmem:[#allocation6 + $0x18] sm:$0xff]
    %v79 = vld [vmem:[%s2] sm:$0x1]
    %v81 = vperm.slane %v79, 0
    %vm83 = vcmask 261120
    %v85 = vsel %vm83, %v74, 0
    %87 = vmatpush.msra.mxu0 0.0
    %88 = vmatpush.msra.mxu0 0.0
    %89 = vmatpush.msra.mxu0 0.0
    %90 = vmatpush.msra.mxu0 0.0
    %91 = vmatpush.msra.mxu0 0.0
    %92 = vmatpush.msra.mxu0 0.0
    %93 = vmatpush.msra.mxu0 0.0
    %94 = vmatpush.msra.mxu0 0.0
    %95 = vmatpush.msra.mxu0 0.0
    %96 = vmatpush.msra.mxu0 0.0
    %97 = vmatpush.msra.mxu0 0.0
    %98 = vmatpush.msra.mxu0 0.0
    %99 = vmatpush.msra.mxu0 %v78
    %100 = vmatpush.msra.mxu0 %v77
    %101 = vmatpush.msra.mxu0 %v76
    %102 = vmatpush.msra.mxu0 %v75
    %103 = vmatmul.f32.gmra.mxu0 %v85
    %v104 = vpop.f32.mrf.mxu0
    %v105 = vadd.f32 %v81, %v104
    %106 = vdwg.mxu0
    %v107 = vmax.f32 %v105, 0.0
    %v108 = vld [vmem:[#allocation8] sm:$0xff]
    %v109 = vld [vmem:[#allocation8 + $0x8] sm:$0xff]
    %v110 = vld [vmem:[#allocation8 + $0x10] sm:$0xff]
    %v111 = vld [vmem:[#allocation8 + $0x18] sm:$0xff]
    %v112 = vld [vmem:[#allocation8 + $0x20] sm:$0xff]
    %v113 = vld [vmem:[#allocation8 + $0x28] sm:$0xff]
    %v114 = vld [vmem:[#allocation8 + $0x30] sm:$0xff]
    %v115 = vld [vmem:[#allocation8 + $0x38] sm:$0xff]
    %v116 = vld [vmem:[#allocation8 + $0x40] sm:$0xff]
    %v117 = vld [vmem:[#allocation8 + $0x48] sm:$0xff]
    %v118 = vld [vmem:[#allocation8 + $0x50] sm:$0xff]
    %v119 = vld [vmem:[#allocation8 + $0x58] sm:$0xff]
    %v120 = vld [vmem:[#allocation8 + $0x60] sm:$0xff]
    %v121 = vld [vmem:[#allocation8 + $0x68] sm:$0xff]
    %v122 = vld [vmem:[#allocation8 + $0x70] sm:$0xff]
    %v123 = vld [vmem:[#allocation8 + $0x78] sm:$0xff]
    %v124 = vld [vmem:[%s4] sm:$0x1]
    %v126 = vperm.slane %v124, 0
    %128 = vmatpush.msra.mxu0 %v123
    %129 = vmatpush.msra.mxu0 %v122
    %130 = vmatpush.msra.mxu0 %v121
    %131 = vmatpush.msra.mxu0 %v120
    %132 = vmatpush.msra.mxu0 %v119
    %133 = vmatpush.msra.mxu0 %v118
    %134 = vmatpush.msra.mxu0 %v117
    %135 = vmatpush.msra.mxu0 %v116
    %136 = vmatpush.msra.mxu0 %v115
    %137 = vmatpush.msra.mxu0 %v114
    %138 = vmatpush.msra.mxu0 %v113
    %139 = vmatpush.msra.mxu0 %v112
    %140 = vmatpush.msra.mxu0 %v111
    %141 = vmatpush.msra.mxu0 %v110
    %142 = vmatpush.msra.mxu0 %v109
    %143 = vmatpush.msra.mxu0 %v108
    %144 = vmatmul.f32.gmra.mxu0 %v107
    %v145 = vpop.f32.mrf.mxu0
    %v146 = vadd.f32 %v126, %v145
    %147 = vdwg.mxu0
    %v148 = vmax.f32 %v146, 0.0
    %v149 = vld [vmem:[%s5] sm:$0x1]
    %v150 = vld [vmem:[#allocation2] sm:$0x1]
    %152 = vset.pattern.permute.xlu0 0
    %153 = vperm.xlu0 %152, %v150
    %v154 = vpop.permute.xlu0 %153
    %v156 = vperm.slane %v154, 0
    %157 = vmatpush.xpose.msra.mxu0 0.0
    %158 = vmatpush.xpose.msra.mxu0 0.0
    %159 = vmatpush.xpose.msra.mxu0 0.0
    %160 = vmatpush.xpose.msra.mxu0 0.0
    %161 = vmatpush.xpose.msra.mxu0 0.0
    %162 = vmatpush.xpose.msra.mxu0 0.0
    %163 = vmatpush.xpose.msra.mxu0 0.0
    %164 = vmatpush.xpose.msra.mxu0 0.0
    %165 = vmatpush.xpose.msra.mxu0 0.0
    %166 = vmatpush.xpose.msra.mxu0 0.0
    %167 = vmatpush.xpose.msra.mxu0 0.0
    %168 = vmatpush.xpose.msra.mxu0 0.0
    %169 = vmatpush.xpose.msra.mxu0 0.0
    %170 = vmatpush.xpose.msra.mxu0 0.0
    %171 = vmatpush.xpose.msra.mxu0 0.0
    %172 = vmatpush.xpose.msra.mxu0 %v148
    %173 = vmatmul.f32.gmra.mxu0 %v149
    %v174 = vpop.f32.mrf.mxu0
    %v175 = vadd.f32 %v156, %v174
    %176 = vdwg.mxu0
    %vm177 = vcmask 57344
    %178 = vst.msk [vmem:[#allocation9] sm:$0x1] %vm177, %v175
    // Predicated region
    $region42: #{tpu_custom_call.1} parent=1 // pred_check
      _
    $region43: #{tpu_custom_call.1} parent=1 // pred_check_branch
      %180 = sbr.rel (0) target = $region45
    $region44: #{tpu_custom_call.1} parent=1 // pred_region
      %182 = vsyncadd [#allocation5], 0
      %s184 = sshll.u32 [#allocation9], 4
      %s185 = int_to_ptr.vmem [resolvable:$true] %s184
      %s186 = sshll.u32 %s7, 4
      %s187 = int_to_ptr.hbm [resolvable:$true] %s186
      %189 = dma.vmem_to_hbm [thread:$0]  %s185, 16, %s187, [#allocation5]
    $region45: #{tpu_custom_call.1} parent=1 // pred_fallthru
      _
    // Predicated region
    $region46: #{tpu_custom_call.1} parent=1 // pred_check
      _
    $region47: #{tpu_custom_call.1} parent=1 // pred_check_branch
      %191 = sbr.rel (0) target = $region49
    $region48: #{tpu_custom_call.1} parent=1 // pred_region
      %193 = dma.done [#allocation5], 16
    $region49: #{tpu_custom_call.1} parent=1 // pred_fallthru
      _
    %194 = vsyncpa [#allocation4], 1
    %195 = vsyncpa [#allocation7], 1
    %196 = vsyncpa [#allocation5], 1

</llo_original>
